<compile_context>
chip_gen: v5e
topology: v5e:2x2
jax: 0.10.0
libtpu: 0.0.40
codegen_flags: <defaults>
</compile_context>

<pallas_src>
import functools

import jax
import jax.numpy as jnp
from jax.experimental import pallas as pl
from jax.experimental.pallas import tpu as pltpu

LANE = 128
BF16_SUBLANE = 16  # bf16 packs 16 rows per sublane-vreg group


def _round_up(v, m):
    return ((v + m - 1) // m) * m


# ----------------------------- Pallas kernel --------------------------------

def _graphnet_fused_kernel(a_ref, dinv_ref, x_ref, w_ref, b_ref, o_ref, *,
                           num_gcn_layers, n_a):
    """All GCN layers + the Linear head, fused; activation never leaves VMEM.

    a_ref:    [Na, Na]      bf16  A + I over the first Na flattened nodes
    dinv_ref: [Na, 1]       f32   deg^{-1/2} (deg >= 1: self-loops everywhere)
    x_ref:    [Np, Fp]      f32   zero-padded node features (Np >= Na)
    w_ref:    [L+1, Fp, Fp] bf16  stacked zero-padded weights (last = linear head)
    b_ref:    [L+1, 1, Fp]  f32   stacked zero-padded biases
    o_ref:    [Np, Fp]      f32
    """
    a = a_ref[...]              # bf16 - the only copy of A in the kernel
    dinv = dinv_ref[...]        # f32 [Na, 1]
    n_pad = x_ref.shape[0]
    n_rest = n_pad - n_a        # rows with only a self-loop: pure pass-through

    h_top = x_ref[:n_a, :]
    h_rest = x_ref[n_a:, :] if n_rest > 0 else None

    for layer in range(num_gcn_layers):
        w = w_ref[layer]        # bf16 [Fp, Fp]
        b = b_ref[layer]        # f32  [1, Fp]
        # Feature transform (bf16 MXU inputs, f32 accumulation).
        xw = jnp.dot(h_top.astype(jnp.bfloat16), w,
                     preferred_element_type=jnp.float32)
        # D^{-1/2}(A+I)D^{-1/2} X W  ==  dinv * (A @ (dinv * XW))
        msg = (xw * dinv).astype(jnp.bfloat16)
        agg = jnp.dot(a, msg, preferred_element_type=jnp.float32)
        h_top = jnp.maximum(agg * dinv + b, 0.0)
        if n_rest > 0:
            # Nodes with no incident edges: deg == 1, aggregation is identity.
            xw_r = jnp.dot(h_rest.astype(jnp.bfloat16), w,
                           preferred_element_type=jnp.float32)
            h_rest = jnp.maximum(xw_r + b, 0.0)

    # Final Linear head (no aggregation, no ReLU).
    w_lin = w_ref[num_gcn_layers]
    b_lin = b_ref[num_gcn_layers]
    o_ref[:n_a, :] = (jnp.dot(h_top.astype(jnp.bfloat16), w_lin,
                              preferred_element_type=jnp.float32)
                      + b_lin).astype(o_ref.dtype)
    if n_rest > 0:
        o_ref[n_a:, :] = (jnp.dot(h_rest.astype(jnp.bfloat16), w_lin,
                                  preferred_element_type=jnp.float32)
                          + b_lin).astype(o_ref.dtype)


def _vmem_limit_bytes(n_a, n_pad, f_pad, n_slabs):
    a_b = n_a * n_a * 2
    w_b = n_slabs * f_pad * f_pad * 2
    b_b = n_slabs * f_pad * 4
    io_b = 2 * n_pad * f_pad * 4
    tmp_b = 6 * n_pad * f_pad * 4          # in-loop f32/bf16 temporaries
    total = a_b + w_b + b_b + io_b + tmp_b + n_a * 4 + (8 << 20)
    # Stay within v7x's 64 MiB physical VMEM; never drop below a safe 32 MiB.
    return min(max(total, 32 << 20), 64 << 20)


def graphnet_fused(a_bf16, dinv, x_pad, w_stack, b_stack, *, num_gcn_layers):
    n_a = a_bf16.shape[0]
    n_pad, f_pad = x_pad.shape
    kernel = functools.partial(_graphnet_fused_kernel,
                               num_gcn_layers=num_gcn_layers, n_a=n_a)
    vmem = pl.BlockSpec(memory_space=pltpu.MemorySpace.VMEM)
    return pl.pallas_call(
        kernel,
        out_shape=jax.ShapeDtypeStruct((n_pad, f_pad), jnp.float32),
        # No grid: kernel runs once, every operand single-buffered and whole-
        # array resident in VMEM (a 1-step pipelined grid would double-buffer
        # each operand for zero overlap benefit).
        in_specs=[vmem, vmem, vmem, vmem, vmem],
        out_specs=vmem,
        compiler_params=pltpu.CompilerParams(
            vmem_limit_bytes=_vmem_limit_bytes(n_a, n_pad, f_pad,
                                               w_stack.shape[0])),
    )(a_bf16, dinv, x_pad, w_stack, b_stack)


# ------------------------------- glue (JAX) ----------------------------------

def build_block_adjacency(edge_index, num_nodes, n_a):
    """Dense bf16 (A + I) over the first n_a flattened nodes + f32 deg^{-1/2}.

    Matches GraphNet.filter_invalid_edges + PyG gcn_norm's
    add_remaining_self_loops: explicit self-loop edges are dropped and every
    node gets exactly one weight-1 self-loop. Because valid edges only touch
    flattened node indices < num_nodes, A is built only over the first n_a
    (>= num_nodes, 128-padded) nodes; all later flattened nodes are identity
    rows handled as a pass-through inside the kernel.
    """
    src, dst = edge_index[0], edge_index[1]
    valid = (src < num_nodes) & (dst < num_nodes) & (src != dst)
    w = valid.astype(jnp.float32)
    src_c = jnp.where(valid, src, 0)
    dst_c = jnp.where(valid, dst, 0)
    a = jnp.zeros((n_a, n_a), jnp.float32)
    # message flows source (col) -> target (row): A[target, source] += weight
    a = a.at[dst_c, src_c].add(w)
    diag = jnp.arange(n_a)
    a = a.at[diag, diag].add(1.0)          # self-loops (incl. pad rows) -> deg >= 1
    deg = jnp.sum(a, axis=1, keepdims=True)
    dinv = jax.lax.rsqrt(deg)              # f32 [n_a, 1]
    return a.astype(jnp.bfloat16), dinv    # A entries are small ints -> exact in bf16


class GraphNetPallas:
    def __init__(self, input_dim, hidden_dim, output_dim, num_layers, key):
        self.output_dim = output_dim
        self.num_gcn_layers = num_layers
        dims = [input_dim] + [hidden_dim] * (num_layers - 1) + [output_dim]
        self.f_pad = _round_up(max(dims + [output_dim]), LANE)

        # Stacked, zero-padded weights/biases: GCN layers then the linear head.
        w_slabs, b_slabs = [], []
        for li in range(num_layers):
            f_in, f_out = dims[li], dims[li + 1]
            key, kw = jax.random.split(key)
            scale = 1.0 / jnp.sqrt(jnp.float32(f_in))
            w = jax.random.uniform(kw, (f_in, f_out), jnp.float32, -scale, scale)
            w_slabs.append(jnp.zeros((self.f_pad, self.f_pad), jnp.float32)
                           .at[:f_in, :f_out].set(w))
            b_slabs.append(jnp.zeros((1, self.f_pad), jnp.float32))  # GCNConv bias init = 0

        key, kw, kb = jax.random.split(key, 3)
        scale = 1.0 / jnp.sqrt(jnp.float32(output_dim))
        lin_w = jax.random.uniform(kw, (output_dim, output_dim),
                                   jnp.float32, -scale, scale)
        lin_b = jax.random.uniform(kb, (output_dim,), jnp.float32, -scale, scale)
        w_slabs.append(jnp.zeros((self.f_pad, self.f_pad), jnp.float32)
                       .at[:output_dim, :output_dim].set(lin_w))
        b_slabs.append(jnp.zeros((1, self.f_pad), jnp.float32)
                       .at[0, :output_dim].set(lin_b))

        # bf16 weights (MXU-native), f32 biases.
        self.w_stack = jnp.stack(w_slabs).astype(jnp.bfloat16)   # [L+1, Fp, Fp]
        self.b_stack = jnp.stack(b_slabs)                        # [L+1, 1,  Fp]

    def __call__(self, x, edge_index):
        batch, num_nodes, num_features = x.shape
        total_nodes = batch * num_nodes

        # A block (lane axis of A / contraction depth of A@msg) padded to 128;
        # full flattened row axis padded to a multiple of 16 and >= n_a.
        n_a = _round_up(num_nodes, LANE)
        n_pad = max(_round_up(total_nodes, BF16_SUBLANE), n_a)

        a_bf16, dinv = build_block_adjacency(edge_index, num_nodes, n_a)

        x_flat = x.reshape(total_nodes, num_features).astype(jnp.float32)
        x_pad = jnp.zeros((n_pad, self.f_pad), jnp.float32)
        x_pad = x_pad.at[:total_nodes, :num_features].set(x_flat)

        out_pad = graphnet_fused(a_bf16, dinv, x_pad, self.w_stack,
                                 self.b_stack,
                                 num_gcn_layers=self.num_gcn_layers)
        out = out_pad[:total_nodes, :self.output_dim]
        return out.reshape(batch, num_nodes, self.output_dim)


# --------------------------------- main ---------------------------------------

if __name__ == "__main__":
    key = jax.random.PRNGKey(0)

    batch, num_nodes = 2, 16
    input_dim, hidden_dim, output_dim, num_layers = 8, 32, 16, 3

    key, kx, ke = jax.random.split(key, 3)
    x = jax.random.normal(kx, (batch, num_nodes, input_dim), jnp.float32)
    # edges in [0, num_nodes + 4): some intentionally out of range to exercise
    # filter_invalid_edges semantics.
    edge_index = jax.random.randint(ke, (2, 24), 0, num_nodes + 4, jnp.int32)

    model = GraphNetPallas(input_dim, hidden_dim, output_dim, num_layers, key)
    out = model(x, edge_index)
    out = jax.block_until_ready(out)

    assert out.shape == (batch, num_nodes, output_dim)
    assert bool(jnp.all(jnp.isfinite(out)))
    print("KERNEL_OK")
</pallas_src>

<mosaic_0001>
module attributes {stable_mosaic.version = 11 : i64} {
  func.func @_graphnet_fused_kernel(%arg0: memref<128x128xbf16, #tpu.memory_space<vmem>>, %arg1: memref<128x1xf32, #tpu.memory_space<vmem>>, %arg2: memref<128x128xf32, #tpu.memory_space<vmem>>, %arg3: memref<4x128x128xbf16, #tpu.memory_space<vmem>>, %arg4: memref<4x1x128xf32, #tpu.memory_space<vmem>>, %arg5: memref<128x128xf32, #tpu.memory_space<vmem>>) attributes {dimension_semantics = [], scalar_prefetch = 0 : i64, scratch_operands = 0 : i64, tpu.core_type = #tpu.core_type<tc>} {
    %c0 = arith.constant 0 : index
    %c0_0 = arith.constant 0 : index
    %0 = vector.load %arg0[%c0, %c0_0] : memref<128x128xbf16, #tpu.memory_space<vmem>>, vector<128x128xbf16>
    %c0_1 = arith.constant 0 : index
    %c0_2 = arith.constant 0 : index
    %1 = vector.load %arg1[%c0_1, %c0_2] : memref<128x1xf32, #tpu.memory_space<vmem>>, vector<128x1xf32>
    %c0_3 = arith.constant 0 : index
    %c0_4 = arith.constant 0 : index
    %2 = vector.load %arg2[%c0_3, %c0_4] : memref<128x128xf32, #tpu.memory_space<vmem>>, vector<128x128xf32>
    %c0_5 = arith.constant 0 : index
    %c0_6 = arith.constant 0 : index
    %c0_7 = arith.constant 0 : index
    %3 = vector.load %arg3[%c0_5, %c0_6, %c0_7] : memref<4x128x128xbf16, #tpu.memory_space<vmem>>, vector<1x128x128xbf16>
    %4 = vector.shape_cast %3 : vector<1x128x128xbf16> to vector<128x128xbf16>
    %c0_8 = arith.constant 0 : index
    %c0_9 = arith.constant 0 : index
    %c0_10 = arith.constant 0 : index
    %5 = vector.load %arg4[%c0_8, %c0_9, %c0_10] : memref<4x1x128xf32, #tpu.memory_space<vmem>>, vector<1x1x128xf32>
    %6 = vector.shape_cast %5 : vector<1x1x128xf32> to vector<1x128xf32>
    %7 = arith.truncf %2 : vector<128x128xf32> to vector<128x128xbf16>
    %cst = arith.constant dense<0.000000e+00> : vector<128x128xf32>
    %8 = tpu.matmul %7, %4, %cst {dimension_numbers = #tpu.dot_dimension_numbers<[1], [0], [0], [1], [0, 0, 1, 1], [], []>} : vector<128x128xbf16>, vector<128x128xbf16>, vector<128x128xf32> -> vector<128x128xf32>
    %9 = vector.broadcast %1 : vector<128x1xf32> to vector<128x128xf32>
    %10 = arith.mulf %8, %9 : vector<128x128xf32>
    %11 = arith.truncf %10 : vector<128x128xf32> to vector<128x128xbf16>
    %cst_11 = arith.constant dense<0.000000e+00> : vector<128x128xf32>
    %12 = tpu.matmul %0, %11, %cst_11 {dimension_numbers = #tpu.dot_dimension_numbers<[1], [0], [0], [1], [0, 0, 1, 1], [], []>} : vector<128x128xbf16>, vector<128x128xbf16>, vector<128x128xf32> -> vector<128x128xf32>
    %13 = vector.broadcast %1 : vector<128x1xf32> to vector<128x128xf32>
    %14 = arith.mulf %12, %13 : vector<128x128xf32>
    %15 = vector.broadcast %6 : vector<1x128xf32> to vector<128x128xf32>
    %16 = arith.addf %14, %15 : vector<128x128xf32>
    %cst_12 = arith.constant 0.000000e+00 : f32
    %17 = vector.broadcast %cst_12 : f32 to vector<128x128xf32>
    %18 = arith.maximumf %16, %17 : vector<128x128xf32>
    %c1 = arith.constant 1 : index
    %c0_13 = arith.constant 0 : index
    %c0_14 = arith.constant 0 : index
    %19 = vector.load %arg3[%c1, %c0_13, %c0_14] : memref<4x128x128xbf16, #tpu.memory_space<vmem>>, vector<1x128x128xbf16>
    %20 = vector.shape_cast %19 : vector<1x128x128xbf16> to vector<128x128xbf16>
    %c1_15 = arith.constant 1 : index
    %c0_16 = arith.constant 0 : index
    %c0_17 = arith.constant 0 : index
    %21 = vector.load %arg4[%c1_15, %c0_16, %c0_17] : memref<4x1x128xf32, #tpu.memory_space<vmem>>, vector<1x1x128xf32>
    %22 = vector.shape_cast %21 : vector<1x1x128xf32> to vector<1x128xf32>
    %23 = arith.truncf %18 : vector<128x128xf32> to vector<128x128xbf16>
    %cst_18 = arith.constant dense<0.000000e+00> : vector<128x128xf32>
    %24 = tpu.matmul %23, %20, %cst_18 {dimension_numbers = #tpu.dot_dimension_numbers<[1], [0], [0], [1], [0, 0, 1, 1], [], []>} : vector<128x128xbf16>, vector<128x128xbf16>, vector<128x128xf32> -> vector<128x128xf32>
    %25 = vector.broadcast %1 : vector<128x1xf32> to vector<128x128xf32>
    %26 = arith.mulf %24, %25 : vector<128x128xf32>
    %27 = arith.truncf %26 : vector<128x128xf32> to vector<128x128xbf16>
    %cst_19 = arith.constant dense<0.000000e+00> : vector<128x128xf32>
    %28 = tpu.matmul %0, %27, %cst_19 {dimension_numbers = #tpu.dot_dimension_numbers<[1], [0], [0], [1], [0, 0, 1, 1], [], []>} : vector<128x128xbf16>, vector<128x128xbf16>, vector<128x128xf32> -> vector<128x128xf32>
    %29 = vector.broadcast %1 : vector<128x1xf32> to vector<128x128xf32>
    %30 = arith.mulf %28, %29 : vector<128x128xf32>
    %31 = vector.broadcast %22 : vector<1x128xf32> to vector<128x128xf32>
    %32 = arith.addf %30, %31 : vector<128x128xf32>
    %cst_20 = arith.constant 0.000000e+00 : f32
    %33 = vector.broadcast %cst_20 : f32 to vector<128x128xf32>
    %34 = arith.maximumf %32, %33 : vector<128x128xf32>
    %c2 = arith.constant 2 : index
    %c0_21 = arith.constant 0 : index
    %c0_22 = arith.constant 0 : index
    %35 = vector.load %arg3[%c2, %c0_21, %c0_22] : memref<4x128x128xbf16, #tpu.memory_space<vmem>>, vector<1x128x128xbf16>
    %36 = vector.shape_cast %35 : vector<1x128x128xbf16> to vector<128x128xbf16>
    %c2_23 = arith.constant 2 : index
    %c0_24 = arith.constant 0 : index
    %c0_25 = arith.constant 0 : index
    %37 = vector.load %arg4[%c2_23, %c0_24, %c0_25] : memref<4x1x128xf32, #tpu.memory_space<vmem>>, vector<1x1x128xf32>
    %38 = vector.shape_cast %37 : vector<1x1x128xf32> to vector<1x128xf32>
    %39 = arith.truncf %34 : vector<128x128xf32> to vector<128x128xbf16>
    %cst_26 = arith.constant dense<0.000000e+00> : vector<128x128xf32>
    %40 = tpu.matmul %39, %36, %cst_26 {dimension_numbers = #tpu.dot_dimension_numbers<[1], [0], [0], [1], [0, 0, 1, 1], [], []>} : vector<128x128xbf16>, vector<128x128xbf16>, vector<128x128xf32> -> vector<128x128xf32>
    %41 = vector.broadcast %1 : vector<128x1xf32> to vector<128x128xf32>
    %42 = arith.mulf %40, %41 : vector<128x128xf32>
    %43 = arith.truncf %42 : vector<128x128xf32> to vector<128x128xbf16>
    %cst_27 = arith.constant dense<0.000000e+00> : vector<128x128xf32>
    %44 = tpu.matmul %0, %43, %cst_27 {dimension_numbers = #tpu.dot_dimension_numbers<[1], [0], [0], [1], [0, 0, 1, 1], [], []>} : vector<128x128xbf16>, vector<128x128xbf16>, vector<128x128xf32> -> vector<128x128xf32>
    %45 = vector.broadcast %1 : vector<128x1xf32> to vector<128x128xf32>
    %46 = arith.mulf %44, %45 : vector<128x128xf32>
    %47 = vector.broadcast %38 : vector<1x128xf32> to vector<128x128xf32>
    %48 = arith.addf %46, %47 : vector<128x128xf32>
    %cst_28 = arith.constant 0.000000e+00 : f32
    %49 = vector.broadcast %cst_28 : f32 to vector<128x128xf32>
    %50 = arith.maximumf %48, %49 : vector<128x128xf32>
    %c3 = arith.constant 3 : index
    %c0_29 = arith.constant 0 : index
    %c0_30 = arith.constant 0 : index
    %51 = vector.load %arg3[%c3, %c0_29, %c0_30] : memref<4x128x128xbf16, #tpu.memory_space<vmem>>, vector<1x128x128xbf16>
    %52 = vector.shape_cast %51 : vector<1x128x128xbf16> to vector<128x128xbf16>
    %c3_31 = arith.constant 3 : index
    %c0_32 = arith.constant 0 : index
    %c0_33 = arith.constant 0 : index
    %53 = vector.load %arg4[%c3_31, %c0_32, %c0_33] : memref<4x1x128xf32, #tpu.memory_space<vmem>>, vector<1x1x128xf32>
    %54 = vector.shape_cast %53 : vector<1x1x128xf32> to vector<1x128xf32>
    %55 = arith.truncf %50 : vector<128x128xf32> to vector<128x128xbf16>
    %cst_34 = arith.constant dense<0.000000e+00> : vector<128x128xf32>
    %56 = tpu.matmul %55, %52, %cst_34 {dimension_numbers = #tpu.dot_dimension_numbers<[1], [0], [0], [1], [0, 0, 1, 1], [], []>} : vector<128x128xbf16>, vector<128x128xbf16>, vector<128x128xf32> -> vector<128x128xf32>
    %57 = vector.broadcast %54 : vector<1x128xf32> to vector<128x128xf32>
    %58 = arith.addf %56, %57 : vector<128x128xf32>
    %c0_35 = arith.constant 0 : index
    %c0_36 = arith.constant 0 : index
    %59 = vector.load %arg5[%c0_35, %c0_36] : memref<128x128xf32, #tpu.memory_space<vmem>>, vector<128x128xf32>
    tpu.vector_store %arg5[%c0_35, %c0_36], %58 {strides = array<i32>} : memref<128x128xf32, #tpu.memory_space<vmem>>, vector<128x128xf32>,
    return
  }
}

</mosaic_0001>

<llo_original>
// kernel: tpu_custom_call.1
$region0: #{tpu_custom_call.1}
  #allocation0 [shape = 'u32[]', space=smem, size = 0x4, offset = 0x4, fixed_abs, tag = 'smem constant byte address 0x4 - core index']
  #allocation1 [shape = 'u32[72,128]{1,0:T(1,128)}', space=vmem, size = 0x9000, scoped, tag = 'internal scratch']
  %s0 = inlined_call_operand.hbm [shape: bf16[128,128], index: 0, kind: input, shape index: {}]
  %s1 = inlined_call_operand.vmem [shape: f32[128,1], index: 1, kind: input, shape index: {}]
  %s2 = inlined_call_operand.vmem [shape: f32[128,128], index: 2, kind: input, shape index: {}]
  %s3 = inlined_call_operand.hbm [shape: bf16[4,128,128], index: 3, kind: input, shape index: {}]
  %s4 = inlined_call_operand.vmem [shape: f32[4,1,128], index: 4, kind: input, shape index: {}]
  %s5 = inlined_call_operand.hbm [shape: f32[128,128], index: 5, kind: output, shape index: {}]
  %s6 = sld [smem:[#allocation0]]
  $region38: #{tpu_custom_call.1} parent=0
    _
  %s8 = ssub.s32 1, %s6
  %s9 = scalar_select 0, %s8, %s6
  $region1: #{tpu_custom_call.1} parent=0
    #allocation2 [shape = 'u8[32768]{0}', space=vmem, size = 0x8000, scoped, tag = 'input window, operand 0, single buffered']
    #allocation3 [shape = 's32[1]{0}', space=sflag, size = 0x4, scoped, tag = 'scoped memory for tpu_custom_call.1']
    #allocation4 [shape = 's32[1]{0}', space=sflag, size = 0x4, scoped, tag = 'scoped memory for tpu_custom_call.1']
    #allocation5 [shape = 'u8[131072]{0}', space=vmem, size = 0x20000, scoped, tag = 'input window, operand 3, single buffered']
    #allocation6 [shape = 's32[1]{0}', space=sflag, size = 0x4, scoped, tag = 'scoped memory for tpu_custom_call.1']
    #allocation7 [shape = 'u8[65536]{0}', space=vmem, size = 0x10000, scoped, tag = 'output window, operand 0, single buffered']
    %10 = vsyncpa [#allocation3], 0
    %11 = vsyncpa [#allocation6], 0
    %12 = vsyncpa [#allocation4], 0
    // Predicated region
    $region2: #{tpu_custom_call.1} parent=1 // pred_check
      _
    $region3: #{tpu_custom_call.1} parent=1 // pred_check_branch
      %14 = sbr.rel (0) target = $region5
    $region4: #{tpu_custom_call.1} parent=1 // pred_region
      %16 = vsyncadd [#allocation3], 0
      %s17 = sshll.u32 %s0, 4
      %s18 = int_to_ptr.hbm [resolvable:$true] %s17
      %s19 = sshll.u32 [#allocation2], 4
      %s20 = int_to_ptr.vmem [resolvable:$true] %s19
      %25 = dma.hbm_to_vmem [thread:$0]  %s18, 1024, %s20, [#allocation3], 64, 64, 4
    $region5: #{tpu_custom_call.1} parent=1 // pred_fallthru
      _
    // Predicated region
    $region6: #{tpu_custom_call.1} parent=1 // pred_check
      _
    $region7: #{tpu_custom_call.1} parent=1 // pred_check_branch
      %27 = sbr.rel (0) target = $region9
    $region8: #{tpu_custom_call.1} parent=1 // pred_region
      _
    $region9: #{tpu_custom_call.1} parent=1 // pred_fallthru
      _
    // Predicated region
    $region10: #{tpu_custom_call.1} parent=1 // pred_check
      _
    $region11: #{tpu_custom_call.1} parent=1 // pred_check_branch
      %29 = sbr.rel (0) target = $region13
    $region12: #{tpu_custom_call.1} parent=1 // pred_region
      _
    $region13: #{tpu_custom_call.1} parent=1 // pred_fallthru
      _
    // Predicated region
    $region14: #{tpu_custom_call.1} parent=1 // pred_check
      _
    $region15: #{tpu_custom_call.1} parent=1 // pred_check_branch
      %31 = sbr.rel (0) target = $region17
    $region16: #{tpu_custom_call.1} parent=1 // pred_region
      %33 = vsyncadd [#allocation6], 0
      %s34 = sshll.u32 %s3, 4
      %s35 = int_to_ptr.hbm [resolvable:$true] %s34
      %s36 = sshll.u32 [#allocation5], 4
      %s37 = int_to_ptr.vmem [resolvable:$true] %s36
      %42 = dma.hbm_to_vmem [thread:$0]  %s35, 4096, %s37, [#allocation6], 64, 64, 4
    $region17: #{tpu_custom_call.1} parent=1 // pred_fallthru
      _
    // Predicated region
    $region18: #{tpu_custom_call.1} parent=1 // pred_check
      _
    $region19: #{tpu_custom_call.1} parent=1 // pred_check_branch
      %44 = sbr.rel (0) target = $region21
    $region20: #{tpu_custom_call.1} parent=1 // pred_region
      _
    $region21: #{tpu_custom_call.1} parent=1 // pred_fallthru
      _
    // Predicated region
    $region22: #{tpu_custom_call.1} parent=1 // pred_check
      _
    $region23: #{tpu_custom_call.1} parent=1 // pred_check_branch
      %46 = sbr.rel (0) target = $region25
    $region24: #{tpu_custom_call.1} parent=1 // pred_region
      %48 = dma.done [#allocation3], 1024
    $region25: #{tpu_custom_call.1} parent=1 // pred_fallthru
      _
    // Predicated region
    $region26: #{tpu_custom_call.1} parent=1 // pred_check
      _
    $region27: #{tpu_custom_call.1} parent=1 // pred_check_branch
      %50 = sbr.rel (0) target = $region29
    $region28: #{tpu_custom_call.1} parent=1 // pred_region
      %52 = dma.done [#allocation6], 4096
    $region29: #{tpu_custom_call.1} parent=1 // pred_fallthru
      _
    %v53 = vld [vmem:[#allocation2] sm:$0xf]
    %v54 = vld [vmem:[#allocation2 + $0x4] sm:$0xf]
    %v55 = vld [vmem:[#allocation2 + $0x8] sm:$0xf]
    %v56 = vld [vmem:[#allocation2 + $0xc] sm:$0xf]
    %v57 = vld [vmem:[#allocation2 + $0x10] sm:$0xf]
    %v58 = vld [vmem:[#allocation2 + $0x14] sm:$0xf]
    %v59 = vld [vmem:[#allocation2 + $0x18] sm:$0xf]
    %v60 = vld [vmem:[#allocation2 + $0x1c] sm:$0xf]
    %v61 = vld [vmem:[#allocation2 + $0x20] sm:$0xf]
    %v62 = vld [vmem:[#allocation2 + $0x24] sm:$0xf]
    %v63 = vld [vmem:[#allocation2 + $0x28] sm:$0xf]
    %v64 = vld [vmem:[#allocation2 + $0x2c] sm:$0xf]
    %v65 = vld [vmem:[#allocation2 + $0x30] sm:$0xf]
    %v66 = vld [vmem:[#allocation2 + $0x34] sm:$0xf]
    %v67 = vld [vmem:[#allocation2 + $0x38] sm:$0xf]
    %v68 = vld [vmem:[#allocation2 + $0x3c] sm:$0xf]
    %v69 = vld [vmem:[%s1] sm:$0xff]
    %v70 = vld [vmem:[%s1 + $0x8] sm:$0xff]
    %v71 = vld [vmem:[%s1 + $0x10] sm:$0xff]
    %v72 = vld [vmem:[%s1 + $0x18] sm:$0xff]
    %v73 = vld [vmem:[%s1 + $0x20] sm:$0xff]
    %v74 = vld [vmem:[%s1 + $0x28] sm:$0xff]
    %v75 = vld [vmem:[%s1 + $0x30] sm:$0xff]
    %v76 = vld [vmem:[%s1 + $0x38] sm:$0xff]
    %v77 = vld [vmem:[%s1 + $0x40] sm:$0xff]
    %v78 = vld [vmem:[%s1 + $0x48] sm:$0xff]
    %v79 = vld [vmem:[%s1 + $0x50] sm:$0xff]
    %v80 = vld [vmem:[%s1 + $0x58] sm:$0xff]
    %v81 = vld [vmem:[%s1 + $0x60] sm:$0xff]
    %v82 = vld [vmem:[%s1 + $0x68] sm:$0xff]
    %v83 = vld [vmem:[%s1 + $0x70] sm:$0xff]
    %v84 = vld [vmem:[%s1 + $0x78] sm:$0xff]
    %v85 = vld [vmem:[%s2] sm:$0xff]
    %v86 = vld [vmem:[%s2 + $0x8] sm:$0xff]
    %v87 = vld [vmem:[%s2 + $0x10] sm:$0xff]
    %v88 = vld [vmem:[%s2 + $0x18] sm:$0xff]
    %v89 = vld [vmem:[%s2 + $0x20] sm:$0xff]
    %v90 = vld [vmem:[%s2 + $0x28] sm:$0xff]
    %v91 = vld [vmem:[%s2 + $0x30] sm:$0xff]
    %v92 = vld [vmem:[%s2 + $0x38] sm:$0xff]
    %v93 = vld [vmem:[%s2 + $0x40] sm:$0xff]
    %v94 = vld [vmem:[%s2 + $0x48] sm:$0xff]
    %v95 = vld [vmem:[%s2 + $0x50] sm:$0xff]
    %v96 = vld [vmem:[%s2 + $0x58] sm:$0xff]
    %v97 = vld [vmem:[%s2 + $0x60] sm:$0xff]
    %v98 = vld [vmem:[%s2 + $0x68] sm:$0xff]
    %v99 = vld [vmem:[%s2 + $0x70] sm:$0xff]
    %v100 = vld [vmem:[%s2 + $0x78] sm:$0xff]
    %v101 = vld [vmem:[#allocation5] sm:$0xf]
    %v102 = vld [vmem:[#allocation5 + $0x4] sm:$0xf]
    %v103 = vld [vmem:[#allocation5 + $0x8] sm:$0xf]
    %v104 = vld [vmem:[#allocation5 + $0xc] sm:$0xf]
    %v105 = vld [vmem:[#allocation5 + $0x10] sm:$0xf]
    %v106 = vld [vmem:[#allocation5 + $0x14] sm:$0xf]
    %v107 = vld [vmem:[#allocation5 + $0x18] sm:$0xf]
    %v108 = vld [vmem:[#allocation5 + $0x1c] sm:$0xf]
    %v109 = vld [vmem:[#allocation5 + $0x20] sm:$0xf]
    %v110 = vld [vmem:[#allocation5 + $0x24] sm:$0xf]
    %v111 = vld [vmem:[#allocation5 + $0x28] sm:$0xf]
    %v112 = vld [vmem:[#allocation5 + $0x2c] sm:$0xf]
    %v113 = vld [vmem:[#allocation5 + $0x30] sm:$0xf]
    %v114 = vld [vmem:[#allocation5 + $0x34] sm:$0xf]
    %v115 = vld [vmem:[#allocation5 + $0x38] sm:$0xf]
    %v116 = vld [vmem:[#allocation5 + $0x3c] sm:$0xf]
    %v117 = vld [vmem:[%s4] sm:$0x1]
    %v118 = vpack.c.bf16 %v86, %v85
    %v119 = vpack.c.bf16 %v88, %v87
    %v120 = vpack.c.bf16 %v90, %v89
    %v121 = vpack.c.bf16 %v92, %v91
    %v122 = vpack.c.bf16 %v94, %v93
    %v123 = vpack.c.bf16 %v96, %v95
    %v124 = vpack.c.bf16 %v98, %v97
    %v125 = vpack.c.bf16 %v100, %v99
    %v142 = vunpack.c.l.b16 %v101
    %v143 = vunpack.c.l.b16 %v102
    %v144 = vunpack.c.l.b16 %v103
    %v145 = vunpack.c.l.b16 %v104
    %v146 = vunpack.c.l.b16 %v105
    %v147 = vunpack.c.l.b16 %v106
    %v148 = vunpack.c.l.b16 %v107
    %v149 = vunpack.c.l.b16 %v108
    %v150 = vunpack.c.l.b16 %v109
    %v151 = vunpack.c.l.b16 %v110
    %v152 = vunpack.c.l.b16 %v111
    %v153 = vunpack.c.l.b16 %v112
    %v154 = vunpack.c.l.b16 %v113
    %v155 = vunpack.c.l.b16 %v114
    %v156 = vunpack.c.l.b16 %v115
    %v157 = vunpack.c.l.b16 %v116
    %v158 = vpack.c.b16 %v143, %v142
    %v159 = vpack.c.b16 %v145, %v144
    %v160 = vpack.c.b16 %v147, %v146
    %v161 = vpack.c.b16 %v149, %v148
    %v162 = vpack.c.b16 %v151, %v150
    %v163 = vpack.c.b16 %v153, %v152
    %v164 = vpack.c.b16 %v155, %v154
    %v165 = vpack.c.b16 %v157, %v156
    %174 = vmatpush.bf16.msra.mxu0 %v165
    %175 = vmatpush.bf16.msra.mxu0 %v164
    %176 = vmatpush.bf16.msra.mxu0 %v163
    %177 = vmatpush.bf16.msra.mxu0 %v162
    %178 = vmatpush.bf16.msra.mxu0 %v161
    %179 = vmatpush.bf16.msra.mxu0 %v160
    %180 = vmatpush.bf16.msra.mxu0 %v159
    %181 = vmatpush.bf16.msra.mxu0 %v158
    %182 = vmatmul.bf16.gmra.mxu0 %v118
    %v183 = vpop.f32.mrf.mxu0
    %v184 = vadd.f32 0.0, %v183
    %v185 = vpop.f32.mrf.mxu0
    %v186 = vadd.f32 0.0, %v185
    %187 = vmatmul.bf16.gmra.mxu0 %v119
    %v188 = vpop.f32.mrf.mxu0
    %v189 = vadd.f32 0.0, %v188
    %v190 = vpop.f32.mrf.mxu0
    %v191 = vadd.f32 0.0, %v190
    %192 = vmatmul.bf16.gmra.mxu0 %v120
    %v193 = vpop.f32.mrf.mxu0
    %v194 = vadd.f32 0.0, %v193
    %v195 = vpop.f32.mrf.mxu0
    %v196 = vadd.f32 0.0, %v195
    %197 = vmatmul.bf16.gmra.mxu0 %v121
    %v198 = vpop.f32.mrf.mxu0
    %v199 = vadd.f32 0.0, %v198
    %v200 = vpop.f32.mrf.mxu0
    %v201 = vadd.f32 0.0, %v200
    %202 = vmatmul.bf16.gmra.mxu0 %v122
    %v203 = vpop.f32.mrf.mxu0
    %v204 = vadd.f32 0.0, %v203
    %v205 = vpop.f32.mrf.mxu0
    %v206 = vadd.f32 0.0, %v205
    %207 = vmatmul.bf16.gmra.mxu0 %v123
    %v208 = vpop.f32.mrf.mxu0
    %v209 = vadd.f32 0.0, %v208
    %v210 = vpop.f32.mrf.mxu0
    %v211 = vadd.f32 0.0, %v210
    %212 = vmatmul.bf16.gmra.mxu0 %v124
    %v213 = vpop.f32.mrf.mxu0
    %v214 = vadd.f32 0.0, %v213
    %v215 = vpop.f32.mrf.mxu0
    %v216 = vadd.f32 0.0, %v215
    %217 = vmatmul.bf16.gmra.mxu0 %v125
    %v218 = vpop.f32.mrf.mxu0
    %v219 = vadd.f32 0.0, %v218
    %v220 = vpop.f32.mrf.mxu0
    %v221 = vadd.f32 0.0, %v220
    %222 = vdwg.mxu0
    %224 = vset.pattern.permute.xlu0 0
    %225 = vperm.xlu0 %224, %v69
    %v226 = vpop.permute.xlu0 %225
    %229 = vset.pattern.permute.xlu0 0
    %230 = vperm.xlu0 %229, %v70
    %v231 = vpop.permute.xlu0 %230
    %234 = vset.pattern.permute.xlu0 0
    %235 = vperm.xlu0 %234, %v71
    %v236 = vpop.permute.xlu0 %235
    %239 = vset.pattern.permute.xlu0 0
    %240 = vperm.xlu0 %239, %v72
    %v241 = vpop.permute.xlu0 %240
    %244 = vset.pattern.permute.xlu0 0
    %245 = vperm.xlu0 %244, %v73
    %v246 = vpop.permute.xlu0 %245
    %249 = vset.pattern.permute.xlu0 0
    %250 = vperm.xlu0 %249, %v74
    %v251 = vpop.permute.xlu0 %250
    %254 = vset.pattern.permute.xlu0 0
    %255 = vperm.xlu0 %254, %v75
    %v256 = vpop.permute.xlu0 %255
    %259 = vset.pattern.permute.xlu0 0
    %260 = vperm.xlu0 %259, %v76
    %v261 = vpop.permute.xlu0 %260
    %264 = vset.pattern.permute.xlu0 0
    %265 = vperm.xlu0 %264, %v77
    %v266 = vpop.permute.xlu0 %265
    %269 = vset.pattern.permute.xlu0 0
    %270 = vperm.xlu0 %269, %v78
    %v271 = vpop.permute.xlu0 %270
    %274 = vset.pattern.permute.xlu0 0
    %275 = vperm.xlu0 %274, %v79
    %v276 = vpop.permute.xlu0 %275
    %279 = vset.pattern.permute.xlu0 0
    %280 = vperm.xlu0 %279, %v80
    %v281 = vpop.permute.xlu0 %280
    %284 = vset.pattern.permute.xlu0 0
    %285 = vperm.xlu0 %284, %v81
    %v286 = vpop.permute.xlu0 %285
    %289 = vset.pattern.permute.xlu0 0
    %290 = vperm.xlu0 %289, %v82
    %v291 = vpop.permute.xlu0 %290
    %294 = vset.pattern.permute.xlu0 0
    %295 = vperm.xlu0 %294, %v83
    %v296 = vpop.permute.xlu0 %295
    %299 = vset.pattern.permute.xlu0 0
    %300 = vperm.xlu0 %299, %v84
    %v301 = vpop.permute.xlu0 %300
    %v303 = vmul.f32 %v184, %v226
    %v304 = vmul.f32 %v186, %v231
    %v305 = vmul.f32 %v189, %v236
    %v306 = vmul.f32 %v191, %v241
    %v307 = vmul.f32 %v194, %v246
    %v308 = vmul.f32 %v196, %v251
    %v309 = vmul.f32 %v199, %v256
    %v310 = vmul.f32 %v201, %v261
    %v311 = vmul.f32 %v204, %v266
    %v312 = vmul.f32 %v206, %v271
    %v313 = vmul.f32 %v209, %v276
    %v314 = vmul.f32 %v211, %v281
    %v315 = vmul.f32 %v214, %v286
    %v316 = vmul.f32 %v216, %v291
    %v317 = vmul.f32 %v219, %v296
    %v318 = vmul.f32 %v221, %v301
    %v319 = vpack.c.bf16 %v304, %v303
    %v320 = vpack.c.bf16 %v306, %v305
    %v321 = vpack.c.bf16 %v308, %v307
    %v322 = vpack.c.bf16 %v310, %v309
    %v323 = vpack.c.bf16 %v312, %v311
    %v324 = vpack.c.bf16 %v314, %v313
    %v325 = vpack.c.bf16 %v316, %v315
    %v326 = vpack.c.bf16 %v318, %v317
    %v343 = vunpack.c.l.b16 %v53
    %v344 = vunpack.c.l.b16 %v54
    %v345 = vunpack.c.l.b16 %v55
    %v346 = vunpack.c.l.b16 %v56
    %v347 = vunpack.c.l.b16 %v57
    %v348 = vunpack.c.l.b16 %v58
    %v349 = vunpack.c.l.b16 %v59
    %v350 = vunpack.c.l.b16 %v60
    %v351 = vunpack.c.l.b16 %v61
    %v352 = vunpack.c.l.b16 %v62
    %v353 = vunpack.c.l.b16 %v63
    %v354 = vunpack.c.l.b16 %v64
    %v355 = vunpack.c.l.b16 %v65
    %v356 = vunpack.c.l.b16 %v66
    %v357 = vunpack.c.l.b16 %v67
    %v358 = vunpack.c.l.b16 %v68
    %v359 = vpack.c.b16 %v344, %v343
    %v360 = vpack.c.b16 %v346, %v345
    %v361 = vpack.c.b16 %v348, %v347
    %v362 = vpack.c.b16 %v350, %v349
    %v363 = vpack.c.b16 %v352, %v351
    %v364 = vpack.c.b16 %v354, %v353
    %v365 = vpack.c.b16 %v356, %v355
    %v366 = vpack.c.b16 %v358, %v357
    %375 = vmatpush.bf16.msra.mxu0 %v326
    %376 = vmatpush.bf16.msra.mxu0 %v325
    %377 = vmatpush.bf16.msra.mxu0 %v324
    %378 = vmatpush.bf16.msra.mxu0 %v323
    %379 = vmatpush.bf16.msra.mxu0 %v322
    %380 = vmatpush.bf16.msra.mxu0 %v321
    %381 = vmatpush.bf16.msra.mxu0 %v320
    %382 = vmatpush.bf16.msra.mxu0 %v319
    %383 = vmatmul.bf16.gmra.mxu0 %v359
    %v384 = vpop.f32.mrf.mxu0
    %v385 = vadd.f32 0.0, %v384
    %v386 = vpop.f32.mrf.mxu0
    %v387 = vadd.f32 0.0, %v386
    %388 = vmatmul.bf16.gmra.mxu0 %v360
    %v389 = vpop.f32.mrf.mxu0
    %v390 = vadd.f32 0.0, %v389
    %v391 = vpop.f32.mrf.mxu0
    %v392 = vadd.f32 0.0, %v391
    %393 = vmatmul.bf16.gmra.mxu0 %v361
    %v394 = vpop.f32.mrf.mxu0
    %v395 = vadd.f32 0.0, %v394
    %v396 = vpop.f32.mrf.mxu0
    %v397 = vadd.f32 0.0, %v396
    %398 = vmatmul.bf16.gmra.mxu0 %v362
    %v399 = vpop.f32.mrf.mxu0
    %v400 = vadd.f32 0.0, %v399
    %v401 = vpop.f32.mrf.mxu0
    %v402 = vadd.f32 0.0, %v401
    %403 = vmatmul.bf16.gmra.mxu0 %v363
    %v404 = vpop.f32.mrf.mxu0
    %v405 = vadd.f32 0.0, %v404
    %v406 = vpop.f32.mrf.mxu0
    %v407 = vadd.f32 0.0, %v406
    %408 = vmatmul.bf16.gmra.mxu0 %v364
    %v409 = vpop.f32.mrf.mxu0
    %v410 = vadd.f32 0.0, %v409
    %v411 = vpop.f32.mrf.mxu0
    %v412 = vadd.f32 0.0, %v411
    %413 = vmatmul.bf16.gmra.mxu0 %v365
    %v414 = vpop.f32.mrf.mxu0
    %v415 = vadd.f32 0.0, %v414
    %v416 = vpop.f32.mrf.mxu0
    %v417 = vadd.f32 0.0, %v416
    %418 = vmatmul.bf16.gmra.mxu0 %v366
    %v419 = vpop.f32.mrf.mxu0
    %v420 = vadd.f32 0.0, %v419
    %v421 = vpop.f32.mrf.mxu0
    %v422 = vadd.f32 0.0, %v421
    %423 = vdwg.mxu0
    %v424 = vmul.f32 %v385, %v226
    %v425 = vmul.f32 %v387, %v231
    %v426 = vmul.f32 %v390, %v236
    %v427 = vmul.f32 %v392, %v241
    %v428 = vmul.f32 %v395, %v246
    %v429 = vmul.f32 %v397, %v251
    %v430 = vmul.f32 %v400, %v256
    %v431 = vmul.f32 %v402, %v261
    %v432 = vmul.f32 %v405, %v266
    %v433 = vmul.f32 %v407, %v271
    %v434 = vmul.f32 %v410, %v276
    %v435 = vmul.f32 %v412, %v281
    %v436 = vmul.f32 %v415, %v286
    %v437 = vmul.f32 %v417, %v291
    %v438 = vmul.f32 %v420, %v296
    %v439 = vmul.f32 %v422, %v301
    %v441 = vperm.slane %v117, 0
    %v443 = vadd.f32 %v424, %v441
    %v444 = vadd.f32 %v425, %v441
    %v445 = vadd.f32 %v426, %v441
    %v446 = vadd.f32 %v427, %v441
    %v447 = vadd.f32 %v428, %v441
    %v448 = vadd.f32 %v429, %v441
    %v449 = vadd.f32 %v430, %v441
    %v450 = vadd.f32 %v431, %v441
    %v451 = vadd.f32 %v432, %v441
    %v452 = vadd.f32 %v433, %v441
    %v453 = vadd.f32 %v434, %v441
    %v454 = vadd.f32 %v435, %v441
    %v455 = vadd.f32 %v436, %v441
    %v456 = vadd.f32 %v437, %v441
    %v457 = vadd.f32 %v438, %v441
    %v458 = vadd.f32 %v439, %v441
    %v459 = vmax.f32 %v443, 0.0
    %v460 = vmax.f32 %v444, 0.0
    %v461 = vmax.f32 %v445, 0.0
    %v462 = vmax.f32 %v446, 0.0
    %v463 = vmax.f32 %v447, 0.0
    %v464 = vmax.f32 %v448, 0.0
    %v465 = vmax.f32 %v449, 0.0
    %v466 = vmax.f32 %v450, 0.0
    %v467 = vmax.f32 %v451, 0.0
    %v468 = vmax.f32 %v452, 0.0
    %v469 = vmax.f32 %v453, 0.0
    %v470 = vmax.f32 %v454, 0.0
    %v471 = vmax.f32 %v455, 0.0
    %v472 = vmax.f32 %v456, 0.0
    %v473 = vmax.f32 %v457, 0.0
    %v474 = vmax.f32 %v458, 0.0
    %s475 = scalar_lea.vmem [#allocation5], 64
    %v476 = vld [vmem:[%s475] sm:$0xf]
    %v477 = vld [vmem:[%s475 + $0x4] sm:$0xf]
    %v478 = vld [vmem:[%s475 + $0x8] sm:$0xf]
    %v479 = vld [vmem:[%s475 + $0xc] sm:$0xf]
    %v480 = vld [vmem:[%s475 + $0x10] sm:$0xf]
    %v481 = vld [vmem:[%s475 + $0x14] sm:$0xf]
    %v482 = vld [vmem:[%s475 + $0x18] sm:$0xf]
    %v483 = vld [vmem:[%s475 + $0x1c] sm:$0xf]
    %v484 = vld [vmem:[%s475 + $0x20] sm:$0xf]
    %v485 = vld [vmem:[%s475 + $0x24] sm:$0xf]
    %v486 = vld [vmem:[%s475 + $0x28] sm:$0xf]
    %v487 = vld [vmem:[%s475 + $0x2c] sm:$0xf]
    %v488 = vld [vmem:[%s475 + $0x30] sm:$0xf]
    %v489 = vld [vmem:[%s475 + $0x34] sm:$0xf]
    %v490 = vld [vmem:[%s475 + $0x38] sm:$0xf]
    %v491 = vld [vmem:[%s475 + $0x3c] sm:$0xf]
    %s492 = scalar_lea.vmem %s4, 1
    %v493 = vld [vmem:[%s492] sm:$0x1]
    %v494 = vpack.c.bf16 %v460, %v459
    %v495 = vpack.c.bf16 %v462, %v461
    %v496 = vpack.c.bf16 %v464, %v463
    %v497 = vpack.c.bf16 %v466, %v465
    %v498 = vpack.c.bf16 %v468, %v467
    %v499 = vpack.c.bf16 %v470, %v469
    %v500 = vpack.c.bf16 %v472, %v471
    %v501 = vpack.c.bf16 %v474, %v473
    %v518 = vunpack.c.l.b16 %v476
    %v519 = vunpack.c.l.b16 %v477
    %v520 = vunpack.c.l.b16 %v478
    %v521 = vunpack.c.l.b16 %v479
    %v522 = vunpack.c.l.b16 %v480
    %v523 = vunpack.c.l.b16 %v481
    %v524 = vunpack.c.l.b16 %v482
    %v525 = vunpack.c.l.b16 %v483
    %v526 = vunpack.c.l.b16 %v484
    %v527 = vunpack.c.l.b16 %v485
    %v528 = vunpack.c.l.b16 %v486
    %v529 = vunpack.c.l.b16 %v487
    %v530 = vunpack.c.l.b16 %v488
    %v531 = vunpack.c.l.b16 %v489
    %v532 = vunpack.c.l.b16 %v490
    %v533 = vunpack.c.l.b16 %v491
    %v534 = vpack.c.b16 %v519, %v518
    %v535 = vpack.c.b16 %v521, %v520
    %v536 = vpack.c.b16 %v523, %v522
    %v537 = vpack.c.b16 %v525, %v524
    %v538 = vpack.c.b16 %v527, %v526
    %v539 = vpack.c.b16 %v529, %v528
    %v540 = vpack.c.b16 %v531, %v530
    %v541 = vpack.c.b16 %v533, %v532
    %550 = vmatpush.bf16.msra.mxu0 %v541
    %551 = vmatpush.bf16.msra.mxu0 %v540
    %552 = vmatpush.bf16.msra.mxu0 %v539
    %553 = vmatpush.bf16.msra.mxu0 %v538
    %554 = vmatpush.bf16.msra.mxu0 %v537
    %555 = vmatpush.bf16.msra.mxu0 %v536
    %556 = vmatpush.bf16.msra.mxu0 %v535
    %557 = vmatpush.bf16.msra.mxu0 %v534
    %558 = vmatmul.bf16.gmra.mxu0 %v494
    %v559 = vpop.f32.mrf.mxu0
    %v560 = vadd.f32 0.0, %v559
    %v561 = vpop.f32.mrf.mxu0
    %v562 = vadd.f32 0.0, %v561
    %563 = vmatmul.bf16.gmra.mxu0 %v495
    %v564 = vpop.f32.mrf.mxu0
    %v565 = vadd.f32 0.0, %v564
    %v566 = vpop.f32.mrf.mxu0
    %v567 = vadd.f32 0.0, %v566
    %568 = vmatmul.bf16.gmra.mxu0 %v496
    %v569 = vpop.f32.mrf.mxu0
    %v570 = vadd.f32 0.0, %v569
    %v571 = vpop.f32.mrf.mxu0
    %v572 = vadd.f32 0.0, %v571
    %573 = vmatmul.bf16.gmra.mxu0 %v497
    %v574 = vpop.f32.mrf.mxu0
    %v575 = vadd.f32 0.0, %v574
    %v576 = vpop.f32.mrf.mxu0
    %v577 = vadd.f32 0.0, %v576
    %578 = vmatmul.bf16.gmra.mxu0 %v498
    %v579 = vpop.f32.mrf.mxu0
    %v580 = vadd.f32 0.0, %v579
    %v581 = vpop.f32.mrf.mxu0
    %v582 = vadd.f32 0.0, %v581
    %583 = vmatmul.bf16.gmra.mxu0 %v499
    %v584 = vpop.f32.mrf.mxu0
    %v585 = vadd.f32 0.0, %v584
    %v586 = vpop.f32.mrf.mxu0
    %v587 = vadd.f32 0.0, %v586
    %588 = vmatmul.bf16.gmra.mxu0 %v500
    %v589 = vpop.f32.mrf.mxu0
    %v590 = vadd.f32 0.0, %v589
    %v591 = vpop.f32.mrf.mxu0
    %v592 = vadd.f32 0.0, %v591
    %593 = vmatmul.bf16.gmra.mxu0 %v501
    %v594 = vpop.f32.mrf.mxu0
    %v595 = vadd.f32 0.0, %v594
    %v596 = vpop.f32.mrf.mxu0
    %v597 = vadd.f32 0.0, %v596
    %598 = vdwg.mxu0
    %v599 = vmul.f32 %v560, %v226
    %v600 = vmul.f32 %v562, %v231
    %v601 = vmul.f32 %v565, %v236
    %v602 = vmul.f32 %v567, %v241
    %v603 = vmul.f32 %v570, %v246
    %v604 = vmul.f32 %v572, %v251
    %v605 = vmul.f32 %v575, %v256
    %v606 = vmul.f32 %v577, %v261
    %v607 = vmul.f32 %v580, %v266
    %v608 = vmul.f32 %v582, %v271
    %v609 = vmul.f32 %v585, %v276
    %v610 = vmul.f32 %v587, %v281
    %v611 = vmul.f32 %v590, %v286
    %v612 = vmul.f32 %v592, %v291
    %v613 = vmul.f32 %v595, %v296
    %v614 = vmul.f32 %v597, %v301
    %v615 = vpack.c.bf16 %v600, %v599
    %v616 = vpack.c.bf16 %v602, %v601
    %v617 = vpack.c.bf16 %v604, %v603
    %v618 = vpack.c.bf16 %v606, %v605
    %v619 = vpack.c.bf16 %v608, %v607
    %v620 = vpack.c.bf16 %v610, %v609
    %v621 = vpack.c.bf16 %v612, %v611
    %v622 = vpack.c.bf16 %v614, %v613
    %623 = vmatpush.bf16.msra.mxu0 %v622
    %624 = vmatpush.bf16.msra.mxu0 %v621
    %625 = vmatpush.bf16.msra.mxu0 %v620
    %626 = vmatpush.bf16.msra.mxu0 %v619
    %627 = vmatpush.bf16.msra.mxu0 %v618
    %628 = vmatpush.bf16.msra.mxu0 %v617
    %629 = vmatpush.bf16.msra.mxu0 %v616
    %630 = vmatpush.bf16.msra.mxu0 %v615
    %631 = vmatmul.bf16.gmra.mxu0 %v359
    %v632 = vpop.f32.mrf.mxu0
    %v633 = vadd.f32 0.0, %v632
    %v634 = vpop.f32.mrf.mxu0
    %v635 = vadd.f32 0.0, %v634
    %636 = vmatmul.bf16.gmra.mxu0 %v360
    %v637 = vpop.f32.mrf.mxu0
    %v638 = vadd.f32 0.0, %v637
    %v639 = vpop.f32.mrf.mxu0
    %v640 = vadd.f32 0.0, %v639
    %641 = vmatmul.bf16.gmra.mxu0 %v361
    %v642 = vpop.f32.mrf.mxu0
    %v643 = vadd.f32 0.0, %v642
    %v644 = vpop.f32.mrf.mxu0
    %v645 = vadd.f32 0.0, %v644
    %646 = vmatmul.bf16.gmra.mxu0 %v362
    %v647 = vpop.f32.mrf.mxu0
    %v648 = vadd.f32 0.0, %v647
    %v649 = vpop.f32.mrf.mxu0
    %v650 = vadd.f32 0.0, %v649
    %651 = vmatmul.bf16.gmra.mxu0 %v363
    %v652 = vpop.f32.mrf.mxu0
    %v653 = vadd.f32 0.0, %v652
    %v654 = vpop.f32.mrf.mxu0
    %v655 = vadd.f32 0.0, %v654
    %656 = vmatmul.bf16.gmra.mxu0 %v364
    %v657 = vpop.f32.mrf.mxu0
    %v658 = vadd.f32 0.0, %v657
    %v659 = vpop.f32.mrf.mxu0
    %v660 = vadd.f32 0.0, %v659
    %661 = vmatmul.bf16.gmra.mxu0 %v365
    %v662 = vpop.f32.mrf.mxu0
    %v663 = vadd.f32 0.0, %v662
    %v664 = vpop.f32.mrf.mxu0
    %v665 = vadd.f32 0.0, %v664
    %666 = vmatmul.bf16.gmra.mxu0 %v366
    %v667 = vpop.f32.mrf.mxu0
    %v668 = vadd.f32 0.0, %v667
    %v669 = vpop.f32.mrf.mxu0
    %v670 = vadd.f32 0.0, %v669
    %671 = vdwg.mxu0
    %v672 = vmul.f32 %v633, %v226
    %v673 = vmul.f32 %v635, %v231
    %v674 = vmul.f32 %v638, %v236
    %v675 = vmul.f32 %v640, %v241
    %v676 = vmul.f32 %v643, %v246
    %v677 = vmul.f32 %v645, %v251
    %v678 = vmul.f32 %v648, %v256
    %v679 = vmul.f32 %v650, %v261
    %v680 = vmul.f32 %v653, %v266
    %v681 = vmul.f32 %v655, %v271
    %v682 = vmul.f32 %v658, %v276
    %v683 = vmul.f32 %v660, %v281
    %v684 = vmul.f32 %v663, %v286
    %v685 = vmul.f32 %v665, %v291
    %v686 = vmul.f32 %v668, %v296
    %v687 = vmul.f32 %v670, %v301
    %v689 = vperm.slane %v493, 0
    %v691 = vadd.f32 %v672, %v689
    %v692 = vadd.f32 %v673, %v689
    %v693 = vadd.f32 %v674, %v689
    %v694 = vadd.f32 %v675, %v689
    %v695 = vadd.f32 %v676, %v689
    %v696 = vadd.f32 %v677, %v689
    %v697 = vadd.f32 %v678, %v689
    %v698 = vadd.f32 %v679, %v689
    %v699 = vadd.f32 %v680, %v689
    %v700 = vadd.f32 %v681, %v689
    %v701 = vadd.f32 %v682, %v689
    %v702 = vadd.f32 %v683, %v689
    %v703 = vadd.f32 %v684, %v689
    %v704 = vadd.f32 %v685, %v689
    %v705 = vadd.f32 %v686, %v689
    %v706 = vadd.f32 %v687, %v689
    %v707 = vmax.f32 %v691, 0.0
    %v708 = vmax.f32 %v692, 0.0
    %v709 = vmax.f32 %v693, 0.0
    %v710 = vmax.f32 %v694, 0.0
    %v711 = vmax.f32 %v695, 0.0
    %v712 = vmax.f32 %v696, 0.0
    %v713 = vmax.f32 %v697, 0.0
    %v714 = vmax.f32 %v698, 0.0
    %v715 = vmax.f32 %v699, 0.0
    %v716 = vmax.f32 %v700, 0.0
    %v717 = vmax.f32 %v701, 0.0
    %v718 = vmax.f32 %v702, 0.0
    %v719 = vmax.f32 %v703, 0.0
    %v720 = vmax.f32 %v704, 0.0
    %v721 = vmax.f32 %v705, 0.0
    %v722 = vmax.f32 %v706, 0.0
    %s723 = scalar_lea.vmem [#allocation5], 128
    %v724 = vld [vmem:[%s723] sm:$0xf]
    %v725 = vld [vmem:[%s723 + $0x4] sm:$0xf]
    %v726 = vld [vmem:[%s723 + $0x8] sm:$0xf]
    %v727 = vld [vmem:[%s723 + $0xc] sm:$0xf]
    %v728 = vld [vmem:[%s723 + $0x10] sm:$0xf]
    %v729 = vld [vmem:[%s723 + $0x14] sm:$0xf]
    %v730 = vld [vmem:[%s723 + $0x18] sm:$0xf]
    %v731 = vld [vmem:[%s723 + $0x1c] sm:$0xf]
    %v732 = vld [vmem:[%s723 + $0x20] sm:$0xf]
    %v733 = vld [vmem:[%s723 + $0x24] sm:$0xf]
    %v734 = vld [vmem:[%s723 + $0x28] sm:$0xf]
    %v735 = vld [vmem:[%s723 + $0x2c] sm:$0xf]
    %v736 = vld [vmem:[%s723 + $0x30] sm:$0xf]
    %v737 = vld [vmem:[%s723 + $0x34] sm:$0xf]
    %v738 = vld [vmem:[%s723 + $0x38] sm:$0xf]
    %v739 = vld [vmem:[%s723 + $0x3c] sm:$0xf]
    %s740 = scalar_lea.vmem %s4, 2
    %v741 = vld [vmem:[%s740] sm:$0x1]
    %v742 = vpack.c.bf16 %v708, %v707
    %v743 = vpack.c.bf16 %v710, %v709
    %v744 = vpack.c.bf16 %v712, %v711
    %v745 = vpack.c.bf16 %v714, %v713
    %v746 = vpack.c.bf16 %v716, %v715
    %v747 = vpack.c.bf16 %v718, %v717
    %v748 = vpack.c.bf16 %v720, %v719
    %v749 = vpack.c.bf16 %v722, %v721
    %v766 = vunpack.c.l.b16 %v724
    %v767 = vunpack.c.l.b16 %v725
    %v768 = vunpack.c.l.b16 %v726
    %v769 = vunpack.c.l.b16 %v727
    %v770 = vunpack.c.l.b16 %v728
    %v771 = vunpack.c.l.b16 %v729
    %v772 = vunpack.c.l.b16 %v730
    %v773 = vunpack.c.l.b16 %v731
    %v774 = vunpack.c.l.b16 %v732
    %v775 = vunpack.c.l.b16 %v733
    %v776 = vunpack.c.l.b16 %v734
    %v777 = vunpack.c.l.b16 %v735
    %v778 = vunpack.c.l.b16 %v736
    %v779 = vunpack.c.l.b16 %v737
    %v780 = vunpack.c.l.b16 %v738
    %v781 = vunpack.c.l.b16 %v739
    %v782 = vpack.c.b16 %v767, %v766
    %v783 = vpack.c.b16 %v769, %v768
    %v784 = vpack.c.b16 %v771, %v770
    %v785 = vpack.c.b16 %v773, %v772
    %v786 = vpack.c.b16 %v775, %v774
    %v787 = vpack.c.b16 %v777, %v776
    %v788 = vpack.c.b16 %v779, %v778
    %v789 = vpack.c.b16 %v781, %v780
    %798 = vmatpush.bf16.msra.mxu0 %v789
    %799 = vmatpush.bf16.msra.mxu0 %v788
    %800 = vmatpush.bf16.msra.mxu0 %v787
    %801 = vmatpush.bf16.msra.mxu0 %v786
    %802 = vmatpush.bf16.msra.mxu0 %v785
    %803 = vmatpush.bf16.msra.mxu0 %v784
    %804 = vmatpush.bf16.msra.mxu0 %v783
    %805 = vmatpush.bf16.msra.mxu0 %v782
    %806 = vmatmul.bf16.gmra.mxu0 %v742
    %v807 = vpop.f32.mrf.mxu0
    %v808 = vadd.f32 0.0, %v807
    %v809 = vpop.f32.mrf.mxu0
    %v810 = vadd.f32 0.0, %v809
    %811 = vmatmul.bf16.gmra.mxu0 %v743
    %v812 = vpop.f32.mrf.mxu0
    %v813 = vadd.f32 0.0, %v812
    %v814 = vpop.f32.mrf.mxu0
    %v815 = vadd.f32 0.0, %v814
    %816 = vmatmul.bf16.gmra.mxu0 %v744
    %v817 = vpop.f32.mrf.mxu0
    %v818 = vadd.f32 0.0, %v817
    %v819 = vpop.f32.mrf.mxu0
    %v820 = vadd.f32 0.0, %v819
    %821 = vmatmul.bf16.gmra.mxu0 %v745
    %v822 = vpop.f32.mrf.mxu0
    %v823 = vadd.f32 0.0, %v822
    %v824 = vpop.f32.mrf.mxu0
    %v825 = vadd.f32 0.0, %v824
    %826 = vmatmul.bf16.gmra.mxu0 %v746
    %v827 = vpop.f32.mrf.mxu0
    %v828 = vadd.f32 0.0, %v827
    %v829 = vpop.f32.mrf.mxu0
    %v830 = vadd.f32 0.0, %v829
    %831 = vmatmul.bf16.gmra.mxu0 %v747
    %v832 = vpop.f32.mrf.mxu0
    %v833 = vadd.f32 0.0, %v832
    %v834 = vpop.f32.mrf.mxu0
    %v835 = vadd.f32 0.0, %v834
    %836 = vmatmul.bf16.gmra.mxu0 %v748
    %v837 = vpop.f32.mrf.mxu0
    %v838 = vadd.f32 0.0, %v837
    %v839 = vpop.f32.mrf.mxu0
    %v840 = vadd.f32 0.0, %v839
    %841 = vmatmul.bf16.gmra.mxu0 %v749
    %v842 = vpop.f32.mrf.mxu0
    %v843 = vadd.f32 0.0, %v842
    %v844 = vpop.f32.mrf.mxu0
    %v845 = vadd.f32 0.0, %v844
    %846 = vdwg.mxu0
    %v847 = vmul.f32 %v808, %v226
    %v848 = vmul.f32 %v810, %v231
    %v849 = vmul.f32 %v813, %v236
    %v850 = vmul.f32 %v815, %v241
    %v851 = vmul.f32 %v818, %v246
    %v852 = vmul.f32 %v820, %v251
    %v853 = vmul.f32 %v823, %v256
    %v854 = vmul.f32 %v825, %v261
    %v855 = vmul.f32 %v828, %v266
    %v856 = vmul.f32 %v830, %v271
    %v857 = vmul.f32 %v833, %v276
    %v858 = vmul.f32 %v835, %v281
    %v859 = vmul.f32 %v838, %v286
    %v860 = vmul.f32 %v840, %v291
    %v861 = vmul.f32 %v843, %v296
    %v862 = vmul.f32 %v845, %v301
    %v863 = vpack.c.bf16 %v848, %v847
    %v864 = vpack.c.bf16 %v850, %v849
    %v865 = vpack.c.bf16 %v852, %v851
    %v866 = vpack.c.bf16 %v854, %v853
    %v867 = vpack.c.bf16 %v856, %v855
    %v868 = vpack.c.bf16 %v858, %v857
    %v869 = vpack.c.bf16 %v860, %v859
    %v870 = vpack.c.bf16 %v862, %v861
    %871 = vmatpush.bf16.msra.mxu0 %v870
    %872 = vmatpush.bf16.msra.mxu0 %v869
    %873 = vmatpush.bf16.msra.mxu0 %v868
    %874 = vmatpush.bf16.msra.mxu0 %v867
    %875 = vmatpush.bf16.msra.mxu0 %v866
    %876 = vmatpush.bf16.msra.mxu0 %v865
    %877 = vmatpush.bf16.msra.mxu0 %v864
    %878 = vmatpush.bf16.msra.mxu0 %v863
    %879 = vmatmul.bf16.gmra.mxu0 %v359
    %v880 = vpop.f32.mrf.mxu0
    %v881 = vadd.f32 0.0, %v880
    %v882 = vpop.f32.mrf.mxu0
    %v883 = vadd.f32 0.0, %v882
    %884 = vmatmul.bf16.gmra.mxu0 %v360
    %v885 = vpop.f32.mrf.mxu0
    %v886 = vadd.f32 0.0, %v885
    %v887 = vpop.f32.mrf.mxu0
    %v888 = vadd.f32 0.0, %v887
    %889 = vmatmul.bf16.gmra.mxu0 %v361
    %v890 = vpop.f32.mrf.mxu0
    %v891 = vadd.f32 0.0, %v890
    %v892 = vpop.f32.mrf.mxu0
    %v893 = vadd.f32 0.0, %v892
    %894 = vmatmul.bf16.gmra.mxu0 %v362
    %v895 = vpop.f32.mrf.mxu0
    %v896 = vadd.f32 0.0, %v895
    %v897 = vpop.f32.mrf.mxu0
    %v898 = vadd.f32 0.0, %v897
    %899 = vmatmul.bf16.gmra.mxu0 %v363
    %v900 = vpop.f32.mrf.mxu0
    %v901 = vadd.f32 0.0, %v900
    %v902 = vpop.f32.mrf.mxu0
    %v903 = vadd.f32 0.0, %v902
    %904 = vmatmul.bf16.gmra.mxu0 %v364
    %v905 = vpop.f32.mrf.mxu0
    %v906 = vadd.f32 0.0, %v905
    %v907 = vpop.f32.mrf.mxu0
    %v908 = vadd.f32 0.0, %v907
    %909 = vmatmul.bf16.gmra.mxu0 %v365
    %v910 = vpop.f32.mrf.mxu0
    %v911 = vadd.f32 0.0, %v910
    %v912 = vpop.f32.mrf.mxu0
    %v913 = vadd.f32 0.0, %v912
    %914 = vmatmul.bf16.gmra.mxu0 %v366
    %v915 = vpop.f32.mrf.mxu0
    %v916 = vadd.f32 0.0, %v915
    %v917 = vpop.f32.mrf.mxu0
    %v918 = vadd.f32 0.0, %v917
    %919 = vdwg.mxu0
    %v920 = vmul.f32 %v881, %v226
    %v921 = vmul.f32 %v883, %v231
    %v922 = vmul.f32 %v886, %v236
    %v923 = vmul.f32 %v888, %v241
    %v924 = vmul.f32 %v891, %v246
    %v925 = vmul.f32 %v893, %v251
    %v926 = vmul.f32 %v896, %v256
    %v927 = vmul.f32 %v898, %v261
    %v928 = vmul.f32 %v901, %v266
    %v929 = vmul.f32 %v903, %v271
    %v930 = vmul.f32 %v906, %v276
    %v931 = vmul.f32 %v908, %v281
    %v932 = vmul.f32 %v911, %v286
    %v933 = vmul.f32 %v913, %v291
    %v934 = vmul.f32 %v916, %v296
    %v935 = vmul.f32 %v918, %v301
    %v937 = vperm.slane %v741, 0
    %v939 = vadd.f32 %v920, %v937
    %v940 = vadd.f32 %v921, %v937
    %v941 = vadd.f32 %v922, %v937
    %v942 = vadd.f32 %v923, %v937
    %v943 = vadd.f32 %v924, %v937
    %v944 = vadd.f32 %v925, %v937
    %v945 = vadd.f32 %v926, %v937
    %v946 = vadd.f32 %v927, %v937
    %v947 = vadd.f32 %v928, %v937
    %v948 = vadd.f32 %v929, %v937
    %v949 = vadd.f32 %v930, %v937
    %v950 = vadd.f32 %v931, %v937
    %v951 = vadd.f32 %v932, %v937
    %v952 = vadd.f32 %v933, %v937
    %v953 = vadd.f32 %v934, %v937
    %v954 = vadd.f32 %v935, %v937
    %v955 = vmax.f32 %v939, 0.0
    %v956 = vmax.f32 %v940, 0.0
    %v957 = vmax.f32 %v941, 0.0
    %v958 = vmax.f32 %v942, 0.0
    %v959 = vmax.f32 %v943, 0.0
    %v960 = vmax.f32 %v944, 0.0
    %v961 = vmax.f32 %v945, 0.0
    %v962 = vmax.f32 %v946, 0.0
    %v963 = vmax.f32 %v947, 0.0
    %v964 = vmax.f32 %v948, 0.0
    %v965 = vmax.f32 %v949, 0.0
    %v966 = vmax.f32 %v950, 0.0
    %v967 = vmax.f32 %v951, 0.0
    %v968 = vmax.f32 %v952, 0.0
    %v969 = vmax.f32 %v953, 0.0
    %v970 = vmax.f32 %v954, 0.0
    %s971 = scalar_lea.vmem [#allocation5], 192
    %v972 = vld [vmem:[%s971] sm:$0xf]
    %v973 = vld [vmem:[%s971 + $0x4] sm:$0xf]
    %v974 = vld [vmem:[%s971 + $0x8] sm:$0xf]
    %v975 = vld [vmem:[%s971 + $0xc] sm:$0xf]
    %v976 = vld [vmem:[%s971 + $0x10] sm:$0xf]
    %v977 = vld [vmem:[%s971 + $0x14] sm:$0xf]
    %v978 = vld [vmem:[%s971 + $0x18] sm:$0xf]
    %v979 = vld [vmem:[%s971 + $0x1c] sm:$0xf]
    %v980 = vld [vmem:[%s971 + $0x20] sm:$0xf]
    %v981 = vld [vmem:[%s971 + $0x24] sm:$0xf]
    %v982 = vld [vmem:[%s971 + $0x28] sm:$0xf]
    %v983 = vld [vmem:[%s971 + $0x2c] sm:$0xf]
    %v984 = vld [vmem:[%s971 + $0x30] sm:$0xf]
    %v985 = vld [vmem:[%s971 + $0x34] sm:$0xf]
    %v986 = vld [vmem:[%s971 + $0x38] sm:$0xf]
    %v987 = vld [vmem:[%s971 + $0x3c] sm:$0xf]
    %s988 = scalar_lea.vmem %s4, 3
    %v989 = vld [vmem:[%s988] sm:$0x1]
    %v990 = vpack.c.bf16 %v956, %v955
    %v991 = vpack.c.bf16 %v958, %v957
    %v992 = vpack.c.bf16 %v960, %v959
    %v993 = vpack.c.bf16 %v962, %v961
    %v994 = vpack.c.bf16 %v964, %v963
    %v995 = vpack.c.bf16 %v966, %v965
    %v996 = vpack.c.bf16 %v968, %v967
    %v997 = vpack.c.bf16 %v970, %v969
    %v999 = vperm.slane %v989, 0
    %v1017 = vunpack.c.l.b16 %v972
    %v1018 = vunpack.c.l.b16 %v973
    %v1019 = vunpack.c.l.b16 %v974
    %v1020 = vunpack.c.l.b16 %v975
    %v1021 = vunpack.c.l.b16 %v976
    %v1022 = vunpack.c.l.b16 %v977
    %v1023 = vunpack.c.l.b16 %v978
    %v1024 = vunpack.c.l.b16 %v979
    %v1025 = vunpack.c.l.b16 %v980
    %v1026 = vunpack.c.l.b16 %v981
    %v1027 = vunpack.c.l.b16 %v982
    %v1028 = vunpack.c.l.b16 %v983
    %v1029 = vunpack.c.l.b16 %v984
    %v1030 = vunpack.c.l.b16 %v985
    %v1031 = vunpack.c.l.b16 %v986
    %v1032 = vunpack.c.l.b16 %v987
    %v1033 = vpack.c.b16 %v1018, %v1017
    %v1034 = vpack.c.b16 %v1020, %v1019
    %v1035 = vpack.c.b16 %v1022, %v1021
    %v1036 = vpack.c.b16 %v1024, %v1023
    %v1037 = vpack.c.b16 %v1026, %v1025
    %v1038 = vpack.c.b16 %v1028, %v1027
    %v1039 = vpack.c.b16 %v1030, %v1029
    %v1040 = vpack.c.b16 %v1032, %v1031
    %1049 = vmatpush.bf16.msra.mxu0 %v1040
    %1050 = vmatpush.bf16.msra.mxu0 %v1039
    %1051 = vmatpush.bf16.msra.mxu0 %v1038
    %1052 = vmatpush.bf16.msra.mxu0 %v1037
    %1053 = vmatpush.bf16.msra.mxu0 %v1036
    %1054 = vmatpush.bf16.msra.mxu0 %v1035
    %1055 = vmatpush.bf16.msra.mxu0 %v1034
    %1056 = vmatpush.bf16.msra.mxu0 %v1033
    %1057 = vmatmul.bf16.gmra.mxu0 %v990
    %v1058 = vpop.f32.mrf.mxu0
    %v1059 = vadd.f32 %v999, %v1058
    %v1060 = vpop.f32.mrf.mxu0
    %v1061 = vadd.f32 %v999, %v1060
    %1062 = vmatmul.bf16.gmra.mxu0 %v991
    %v1063 = vpop.f32.mrf.mxu0
    %v1064 = vadd.f32 %v999, %v1063
    %v1065 = vpop.f32.mrf.mxu0
    %v1066 = vadd.f32 %v999, %v1065
    %1067 = vmatmul.bf16.gmra.mxu0 %v992
    %v1068 = vpop.f32.mrf.mxu0
    %v1069 = vadd.f32 %v999, %v1068
    %v1070 = vpop.f32.mrf.mxu0
    %v1071 = vadd.f32 %v999, %v1070
    %1072 = vmatmul.bf16.gmra.mxu0 %v993
    %v1073 = vpop.f32.mrf.mxu0
    %v1074 = vadd.f32 %v999, %v1073
    %v1075 = vpop.f32.mrf.mxu0
    %v1076 = vadd.f32 %v999, %v1075
    %1077 = vmatmul.bf16.gmra.mxu0 %v994
    %v1078 = vpop.f32.mrf.mxu0
    %v1079 = vadd.f32 %v999, %v1078
    %v1080 = vpop.f32.mrf.mxu0
    %v1081 = vadd.f32 %v999, %v1080
    %1082 = vmatmul.bf16.gmra.mxu0 %v995
    %v1083 = vpop.f32.mrf.mxu0
    %v1084 = vadd.f32 %v999, %v1083
    %v1085 = vpop.f32.mrf.mxu0
    %v1086 = vadd.f32 %v999, %v1085
    %1087 = vmatmul.bf16.gmra.mxu0 %v996
    %v1088 = vpop.f32.mrf.mxu0
    %v1089 = vadd.f32 %v999, %v1088
    %v1090 = vpop.f32.mrf.mxu0
    %v1091 = vadd.f32 %v999, %v1090
    %1092 = vmatmul.bf16.gmra.mxu0 %v997
    %v1093 = vpop.f32.mrf.mxu0
    %v1094 = vadd.f32 %v999, %v1093
    %v1095 = vpop.f32.mrf.mxu0
    %v1096 = vadd.f32 %v999, %v1095
    %1097 = vdwg.mxu0
    %1098 = vst [vmem:[#allocation7] sm:$0xff] %v1059
    %1099 = vst [vmem:[#allocation7 + $0x8] sm:$0xff] %v1061
    %1100 = vst [vmem:[#allocation7 + $0x10] sm:$0xff] %v1064
    %1101 = vst [vmem:[#allocation7 + $0x18] sm:$0xff] %v1066
    %1102 = vst [vmem:[#allocation7 + $0x20] sm:$0xff] %v1069
    %1103 = vst [vmem:[#allocation7 + $0x28] sm:$0xff] %v1071
    %1104 = vst [vmem:[#allocation7 + $0x30] sm:$0xff] %v1074
    %1105 = vst [vmem:[#allocation7 + $0x38] sm:$0xff] %v1076
    %1106 = vst [vmem:[#allocation7 + $0x40] sm:$0xff] %v1079
    %1107 = vst [vmem:[#allocation7 + $0x48] sm:$0xff] %v1081
    %1108 = vst [vmem:[#allocation7 + $0x50] sm:$0xff] %v1084
    %1109 = vst [vmem:[#allocation7 + $0x58] sm:$0xff] %v1086
    %1110 = vst [vmem:[#allocation7 + $0x60] sm:$0xff] %v1089
    %1111 = vst [vmem:[#allocation7 + $0x68] sm:$0xff] %v1091
    %1112 = vst [vmem:[#allocation7 + $0x70] sm:$0xff] %v1094
    %1113 = vst [vmem:[#allocation7 + $0x78] sm:$0xff] %v1096
    // Predicated region
    $region30: #{tpu_custom_call.1} parent=1 // pred_check
      _
    $region31: #{tpu_custom_call.1} parent=1 // pred_check_branch
      %1115 = sbr.rel (0) target = $region33
    $region32: #{tpu_custom_call.1} parent=1 // pred_region
      %1117 = vsyncadd [#allocation4], 0
      %s1118 = sshll.u32 [#allocation7], 4
      %s1119 = int_to_ptr.vmem [resolvable:$true] %s1118
      %s1120 = sshll.u32 %s5, 4
      %s1121 = int_to_ptr.hbm [resolvable:$true] %s1120
      %1126 = dma.vmem_to_hbm [thread:$0]  %s1119, 2048, %s1121, [#allocation4], 128, 128, 8
    $region33: #{tpu_custom_call.1} parent=1 // pred_fallthru
      _
    // Predicated region
    $region34: #{tpu_custom_call.1} parent=1 // pred_check
      _
    $region35: #{tpu_custom_call.1} parent=1 // pred_check_branch
      %1128 = sbr.rel (0) target = $region37
    $region36: #{tpu_custom_call.1} parent=1 // pred_region
      %1130 = dma.done [#allocation4], 2048
    $region37: #{tpu_custom_call.1} parent=1 // pred_fallthru
      _
    %1131 = vsyncpa [#allocation3], 1
    %1132 = vsyncpa [#allocation6], 1
    %1133 = vsyncpa [#allocation4], 1

</llo_original>
